<compile_context>
chip_gen: v6e
topology: v6e:2x2x1
jax: 0.10.0
libtpu: 0.0.40
codegen_flags: <defaults>
</compile_context>

<pallas_src>
import numpy as np
import jax
import jax.numpy as jnp
from jax.experimental import pallas as pl
from jax.experimental.pallas import tpu as pltpu


def _build_conv_matrix(weights, C, H, W, K):
    """Dense matrix of the zero-padded KxK cross-correlation on flat H*W.

    Returns M with shape (2*H*W, H*W) such that
        y_flat = concat([channel_sum, channel_max], -1) @ M
    equals conv2d(cat([mean, max], 1), weights, padding=K//2) flattened.
    Rows [0, HW) act on the channel-SUM plane (1/C of the mean folded in),
    rows [HW, 2*HW) act on the channel-MAX plane.
    """
    P = K // 2
    HW = H * W

    # Enumerate (input flat idx, output flat idx, tap idx) triples in numpy
    # (shape-only work; independent of the weight values).
    jr, jc = np.meshgrid(np.arange(H), np.arange(W), indexing="ij")
    rows_i, rows_j, rows_t = [], [], []
    for dy in range(K):
        for dx in range(K):
            ir = jr + dy - P
            ic = jc + dx - P
            valid = (ir >= 0) & (ir < H) & (ic >= 0) & (ic < W)
            rows_i.append((ir * W + ic)[valid])
            rows_j.append((jr * W + jc)[valid])
            rows_t.append(np.full(int(valid.sum()), dy * K + dx, np.int32))
    i_idx = np.concatenate(rows_i)
    j_idx = np.concatenate(rows_j)
    t_idx = np.concatenate(rows_t)

    w = weights.astype(jnp.float32).reshape(2, K * K)
    w = w.at[0].mul(1.0 / float(C))          # fold the 1/C of the channel mean
    vals = w[:, t_idx]                       # (2, nnz)
    M = jnp.zeros((2, HW, HW), jnp.float32).at[:, i_idx, j_idx].add(vals)
    return M.reshape(2 * HW, HW)


def _spatial_attention_kernel(x_ref, m_ref, o_ref):
    # x_ref: (NB, C, HW) VMEM block; m_ref: (2*HW, HW); o_ref: (NB, 1, HW).
    xb = x_ref[...].astype(jnp.float32)                # (NB, C, HW)
    s = jnp.sum(xb, axis=1)                            # channel sum  (NB, HW)
    mx = jnp.max(xb, axis=1)                           # channel max  (NB, HW)
    feat = jnp.concatenate([s, mx], axis=-1)           # (NB, 2*HW), lane-dense

    # Both conv branches + zero padding in one MXU matmul.
    y = jnp.dot(feat, m_ref[...], preferred_element_type=jnp.float32)  # (NB, HW)
    o_ref[:, 0, :] = jax.nn.sigmoid(y).astype(o_ref.dtype)


def spatial_attention_pallas(x, weights):
    """x: (N, C, H, W) f32, weights: (1, 2, K, K) f32 -> (N, 1, H, W)."""
    N, C, H, W = x.shape
    K = weights.shape[-1]
    HW = H * W

    # At most two grid steps: keeps per-step pipeline overhead amortized while
    # exposing a 2-way "parallel" axis for v7x megacore sharding.
    num_steps = 2 if N >= 2 else 1
    NB = pl.cdiv(N, num_steps)           # batch elems per step
    Np = NB * num_steps

    xf = x.reshape(N, C, HW)             # lane-dense: last dim multiple of 128
    if Np != N:
        xf = jnp.concatenate([xf, jnp.zeros((Np - N, C, HW), xf.dtype)], axis=0)

    conv_mat = _build_conv_matrix(weights, C, H, W, K)   # (2*HW, HW)

    out = pl.pallas_call(
        _spatial_attention_kernel,
        out_shape=jax.ShapeDtypeStruct((Np, 1, HW), x.dtype),
        grid=(num_steps,),
        in_specs=[
            pl.BlockSpec((NB, C, HW), lambda n: (n, 0, 0)),
            pl.BlockSpec((2 * HW, HW), lambda n: (0, 0)),   # resident across steps
        ],
        out_specs=pl.BlockSpec((NB, 1, HW), lambda n: (n, 0, 0)),
        compiler_params=pltpu.CompilerParams(dimension_semantics=("parallel",)),
    )(xf, conv_mat)

    return out[:N].reshape(N, 1, H, W)


def spatial_attention_ref(x, weights):
    """Pure-JAX reference (mirrors the PyTorch module) for validation."""
    K = weights.shape[-1]
    P = K // 2
    avg = jnp.mean(x, axis=1, keepdims=True)
    mx = jnp.max(x, axis=1, keepdims=True)
    cat = jnp.concatenate([avg, mx], axis=1)
    y = jax.lax.conv_general_dilated(
        cat, weights, window_strides=(1, 1), padding=[(P, P), (P, P)],
        dimension_numbers=("NCHW", "OIHW", "NCHW"),
        precision=jax.lax.Precision.HIGHEST)
    return jax.nn.sigmoid(y)


if __name__ == "__main__":
    key = jax.random.PRNGKey(0)
    k_x, k_w = jax.random.split(key)

    # Small shapes consistent with the module's forward.
    N, C, H, W = 2, 4, 16, 16
    K = 7

    x = jax.random.normal(k_x, (N, C, H, W), dtype=jnp.float32)
    # Deterministic synthetic conv1 weights, shape (out=1, in=2, K, K), no bias.
    fan_in = 2 * K * K
    weights = jax.random.normal(k_w, (1, 2, K, K), dtype=jnp.float32) / np.sqrt(fan_in)

    out = jax.block_until_ready(spatial_attention_pallas(x, weights))
    ref = jax.block_until_ready(spatial_attention_ref(x, weights))

    assert out.shape == (N, 1, H, W), out.shape
    np.testing.assert_allclose(np.asarray(out), np.asarray(ref), rtol=1e-4, atol=1e-4)

    print("KERNEL_OK")
</pallas_src>

<mosaic_0001>
module attributes {stable_mosaic.version = 11 : i64} {
  func.func @_spatial_attention_kernel(%arg0: i32, %arg1: memref<1x4x256xf32, #tpu.memory_space<vmem>>, %arg2: memref<512x256xf32, #tpu.memory_space<vmem>>, %arg3: memref<1x1x256xf32, #tpu.memory_space<vmem>>) attributes {dimension_semantics = [#tpu.dimension_semantics<parallel>], iteration_bounds = array<i64: 2>, scalar_prefetch = 0 : i64, scratch_operands = 0 : i64, tpu.core_type = #tpu.core_type<tc>, window_params = [{transform_indices = @transform_0, window_bounds = array<i64: 1, 4, 256>}, {pipeline_mode = #tpu.pipeline_mode<synchronous>, transform_indices = @transform_1, window_bounds = array<i64: 512, 256>}, {transform_indices = @transform_2, window_bounds = array<i64: 1, 1, 256>}]} {
    %c0 = arith.constant 0 : index
    %c0_0 = arith.constant 0 : index
    %c0_1 = arith.constant 0 : index
    %0 = vector.load %arg1[%c0, %c0_0, %c0_1] : memref<1x4x256xf32, #tpu.memory_space<vmem>>, vector<1x4x256xf32>
    %cst = arith.constant dense<0.000000e+00> : vector<1x256xf32>
    %1 = vector.multi_reduction <add>, %0, %cst [1] : vector<1x4x256xf32> to vector<1x256xf32>
    %cst_2 = arith.constant dense<0xFF800000> : vector<1x256xf32>
    %2 = vector.multi_reduction <maximumf>, %0, %cst_2 [1] : vector<1x4x256xf32> to vector<1x256xf32>
    %3 = tpu.concatenate %1, %2 in 1 : vector<1x256xf32>, vector<1x256xf32> -> vector<1x512xf32>
    %c0_3 = arith.constant 0 : index
    %c0_4 = arith.constant 0 : index
    %4 = vector.load %arg2[%c0_3, %c0_4] : memref<512x256xf32, #tpu.memory_space<vmem>>, vector<512x256xf32>
    %cst_5 = arith.constant dense<0.000000e+00> : vector<1x256xf32>
    %5 = tpu.matmul %3, %4, %cst_5 {dimension_numbers = #tpu.dot_dimension_numbers<[1], [0], [0], [1], [0, 0, 1, 1], [], []>} : vector<1x512xf32>, vector<512x256xf32>, vector<1x256xf32> -> vector<1x256xf32>
    %6 = arith.negf %5 : vector<1x256xf32>
    %7 = math.exp %6 : vector<1x256xf32>
    %cst_6 = arith.constant 1.000000e+00 : f32
    %8 = vector.broadcast %cst_6 : f32 to vector<1x256xf32>
    %9 = arith.addf %8, %7 : vector<1x256xf32>
    %10 = arith.divf %8, %9 : vector<1x256xf32>
    %c0_7 = arith.constant 0 : index
    %c0_8 = arith.constant 0 : index
    %c0_9 = arith.constant 0 : index
    %11 = vector.load %arg3[%c0_7, %c0_8, %c0_9] : memref<1x1x256xf32, #tpu.memory_space<vmem>>, vector<1x1x256xf32>
    %12 = vector.shape_cast %11 : vector<1x1x256xf32> to vector<1x256xf32>
    %13 = vector.shape_cast %10 : vector<1x256xf32> to vector<1x1x256xf32>
    tpu.vector_store %arg3[%c0_7, %c0_8, %c0_9], %13 {strides = array<i32>} : memref<1x1x256xf32, #tpu.memory_space<vmem>>, vector<1x1x256xf32>,
    return
  }
  func.func @transform_0(%arg0: i32) -> (i32, i32, i32) {
    %c0_i32 = arith.constant 0 : i32
    %c0_i32_0 = arith.constant 0 : i32
    %c0_i32_1 = arith.constant 0 : i32
    return %arg0, %c0_i32, %c0_i32_0 : i32, i32, i32
  }
  func.func @transform_1(%arg0: i32) -> (i32, i32) {
    %c0_i32 = arith.constant 0 : i32
    %c0_i32_0 = arith.constant 0 : i32
    %c0_i32_1 = arith.constant 0 : i32
    return %c0_i32, %c0_i32_0 : i32, i32
  }
  func.func @transform_2(%arg0: i32) -> (i32, i32, i32) {
    %c0_i32 = arith.constant 0 : i32
    %c0_i32_0 = arith.constant 0 : i32
    %c0_i32_1 = arith.constant 0 : i32
    return %arg0, %c0_i32, %c0_i32_0 : i32, i32, i32
  }
}

</mosaic_0001>

<llo_original>
// kernel: tpu_custom_call.1
$region0: #{tpu_custom_call.1}
  #allocation0 [shape = 'u32[]', space=smem, size = 0x4, offset = 0x4, fixed_abs, tag = 'smem constant byte address 0x4 - core index']
  #allocation1 [shape = 'u32[144,128]{1,0:T(1,128)}', space=vmem, size = 0x12000, scoped, tag = 'internal scratch']
  %s0 = inlined_call_operand.hbm [shape: f32[2,4,256], index: 0, kind: input, shape index: {}]
  %s1 = inlined_call_operand.hbm [shape: f32[512,256], index: 1, kind: input, shape index: {}]
  %s2 = inlined_call_operand.hbm [shape: f32[2,1,256], index: 2, kind: output, shape index: {}]
  %s3 = sld [smem:[#allocation0]]
  $region49: #{tpu_custom_call.1} parent=0
    _
  %s5 = ssub.s32 1, %s3
  %s6 = scalar_select 0, %s5, %s3
  $region1: #{tpu_custom_call.1} parent=0
    #allocation2 [shape = 'u8[8192]{0}', space=vmem, size = 0x2000, scoped, tag = 'input window, operand 0']
    #allocation3 [shape = 's32[2]{0}', space=sflag, size = 0x8, scoped, tag = 'scoped memory for tpu_custom_call.1']
    #allocation4 [shape = 's32[2]{0}', space=sflag, size = 0x8, scoped, tag = 'scoped memory for tpu_custom_call.1']
    #allocation5 [shape = 'u8[524288]{0}', space=vmem, size = 0x80000, scoped, tag = 'input window, operand 1, single buffered']
    #allocation6 [shape = 's32[1]{0}', space=sflag, size = 0x4, scoped, tag = 'scoped memory for tpu_custom_call.1']
    #allocation7 [shape = 'u8[2048]{0}', space=vmem, size = 0x800, scoped, tag = 'output window, operand 0']
    %7 = vsyncpa [#allocation3], 0
    %s8 = scalar_lea.sflag [#allocation3], 1
    %9 = vsyncpa %s8, 0
    %10 = vsyncpa [#allocation6], 0
    %11 = vsyncpa [#allocation4], 0
    %s12 = scalar_lea.sflag [#allocation4], 1
    %13 = vsyncpa %s12, 0
    loop: start=0, step=1, limit=4
    $region2: #{tpu_custom_call.1} parent=1 // loop_pre_header
      _
    $region3: #{tpu_custom_call.1} parent=1 // loop_header
      %s15 = sphi 0, %s19
      %p16 = scmp.ge.s32.totalorder %s15, 4
      %s25 = sphi 0, %s27
      %s28 = sphi 0, %s25
      %s29 = sphi 0, %s28
      %s45 = sphi 0, %s29
      %s49 = sphi 0, %s49
      %s51 = sphi 0, %s49
      %s52 = sphi 0, %s51
      %s66 = sphi 0, %s52
      %s72 = sphi 0, %s74
      %s75 = sphi 0, %s72
      %s76 = sphi 0, %s75
      %s92 = sphi 0, %s76
    $region4: #{tpu_custom_call.1} parent=1 // loop_header_branch
      %18 = sbr.rel (%p16) target = $region8
    $region5: #{tpu_custom_call.1} parent=1 // loop_body
      %s20 = ssub.s32 %s15, 1
      %s21 = ssub.s32 %s15, 2
      %s22 = sadd.s32 %s15, 1
      %s23 = ssub.s32 %s15, %s22
      %p24 = scmp.eq.s32.totalorder %s23, 0
      %s26 = sadd.s32 %s25, 1
      %s27 = scalar_select %p24, %s25, %s26
      %p30 = pneg %p24
      %p31 = scmp.eq.s32.totalorder %s15, 1
      %p32 = por %p30, %p31
      %p33 = scmp.ne.s32.totalorder %s25, %s28
      %p34 = scmp.eq.s32.totalorder %s15, 0
      %p35 = por %p33, %p34
      %p36 = scmp.ne.s32.totalorder %s25, %s28
      %p37 = scmp.eq.s32.totalorder %s20, 1
      %p38 = por %p36, %p37
      %p39 = scmp.ne.s32.totalorder %s28, %s29
      %p40 = scmp.eq.s32.totalorder %s20, 0
      %p41 = por %p39, %p40
      %p42 = scmp.ne.s32.totalorder %s28, %s29
      %p43 = scmp.eq.s32.totalorder %s21, 1
      %p44 = por %p42, %p43
      %p46 = scmp.ne.s32.totalorder %s29, %s45
      %p47 = scmp.eq.s32.totalorder %s21, 0
      %p48 = por %p46, %p47
      %s50 = sadd.s32 %s49, 1
      %p53 = scmp.eq.s32.totalorder %s15, 1
      %p54 = scmp.ne.s32.totalorder %s49, %s51
      %p55 = scmp.eq.s32.totalorder %s15, 0
      %p56 = por %p54, %p55
      %p57 = scmp.ne.s32.totalorder %s49, %s51
      %p58 = scmp.eq.s32.totalorder %s20, 1
      %p59 = por %p57, %p58
      %p60 = scmp.ne.s32.totalorder %s51, %s52
      %p61 = scmp.eq.s32.totalorder %s20, 0
      %p62 = por %p60, %p61
      %p63 = scmp.ne.s32.totalorder %s51, %s52
      %p64 = scmp.eq.s32.totalorder %s21, 1
      %p65 = por %p63, %p64
      %p67 = scmp.ne.s32.totalorder %s52, %s66
      %p68 = scmp.eq.s32.totalorder %s21, 0
      %p69 = por %p67, %p68
      %s70 = ssub.s32 %s15, %s22
      %p71 = scmp.eq.s32.totalorder %s70, 0
      %s73 = sadd.s32 %s72, 1
      %s74 = scalar_select %p71, %s72, %s73
      %p77 = pneg %p71
      %p78 = scmp.eq.s32.totalorder %s15, 1
      %p79 = por %p77, %p78
      %p80 = scmp.ne.s32.totalorder %s72, %s75
      %p81 = scmp.eq.s32.totalorder %s15, 0
      %p82 = por %p80, %p81
      %p83 = scmp.ne.s32.totalorder %s72, %s75
      %p84 = scmp.eq.s32.totalorder %s20, 1
      %p85 = por %p83, %p84
      %p86 = scmp.ne.s32.totalorder %s75, %s76
      %p87 = scmp.eq.s32.totalorder %s20, 0
      %p88 = por %p86, %p87
      %p89 = scmp.ne.s32.totalorder %s75, %s76
      %p90 = scmp.eq.s32.totalorder %s21, 1
      %p91 = por %p89, %p90
      %p93 = scmp.ne.s32.totalorder %s76, %s92
      %p94 = scmp.eq.s32.totalorder %s21, 0
      %p95 = por %p93, %p94
      %p96 = scmp.le.s32.totalorder 1, %s15
      %p97 = scmp.lt.s32.totalorder %s15, 3
      %p98 = pnand %p96, %p97
      %p99 = pneg %p98
      // Predicated region
      $region9: #{tpu_custom_call.1} parent=5 // pred_check
        _
      $region10: #{tpu_custom_call.1} parent=5 // pred_check_branch
        %101 = sbr.rel (%p98) target = $region12
      $region11: #{tpu_custom_call.1} parent=5 // pred_region
        %s102 = ssub.s32 %s15, 1
        // Predicated region
        $region13: #{tpu_custom_call.1} parent=11 // pred_check
          %p103 = pneg %p62
        $region14: #{tpu_custom_call.1} parent=11 // pred_check_branch
          %105 = sbr.rel (%p103) target = $region16
        $region15: #{tpu_custom_call.1} parent=11 // pred_region
          %s107 = ssub.s32 16384, 16384
          %108 = vsyncadd [#allocation6], %s107
          %s109 = sshll.u32 [#allocation5], 4
          %s110 = int_to_ptr.vmem [resolvable:$true] %s109
          %115 = dma.hbm_to_vmem [thread:$0]  %s1, 16384, %s110, [#allocation6], 256, 256, 16
        $region16: #{tpu_custom_call.1} parent=11 // pred_fallthru
          _
      $region12: #{tpu_custom_call.1} parent=5 // pred_fallthru
        _
      %p116 = scmp.lt.s32.totalorder %s15, 2
      // Predicated region
      $region17: #{tpu_custom_call.1} parent=5 // pred_check
        %p117 = pneg %p116
      $region18: #{tpu_custom_call.1} parent=5 // pred_check_branch
        %119 = sbr.rel (%p117) target = $region20
      $region19: #{tpu_custom_call.1} parent=5 // pred_region
        // Predicated region
        $region21: #{tpu_custom_call.1} parent=19 // pred_check
          %p120 = pneg %p35
        $region22: #{tpu_custom_call.1} parent=19 // pred_check_branch
          %122 = sbr.rel (%p120) target = $region24
        $region23: #{tpu_custom_call.1} parent=19 // pred_region
          %s123 = sand.u32 %s25, 1
          %s124 = scalar_lea.sflag [#allocation3], %s123
          %s125 = sand.u32 %s25, 1
          %s126 = smul.addr %s125, 8
          %s127 = scalar_lea.vmem [#allocation2], %s126
          %s129 = ssub.s32 128, 128
          %130 = vsyncadd %s124, %s129
          %s131 = smul.addr %s15, 2
          %s132 = smul.addr %s131, 64
          %s133 = scalar_lea.hbm %s0, %s132
          %s135 = sshll.u32 %s127, 4
          %s136 = int_to_ptr.vmem [resolvable:$true] %s135
          %138 = dma.hbm_to_vmem [thread:$0]  %s133, 128, %s136, %s124
        $region24: #{tpu_custom_call.1} parent=19 // pred_fallthru
          _
      $region20: #{tpu_custom_call.1} parent=5 // pred_fallthru
        _
      %p139 = scmp.le.s32.totalorder 1, %s15
      %p140 = scmp.lt.s32.totalorder %s15, 3
      %p141 = pnand %p139, %p140
      %p142 = pneg %p141
      // Predicated region
      $region25: #{tpu_custom_call.1} parent=5 // pred_check
        _
      $region26: #{tpu_custom_call.1} parent=5 // pred_check_branch
        %144 = sbr.rel (%p141) target = $region28
      $region27: #{tpu_custom_call.1} parent=5 // pred_region
        %s145 = ssub.s32 %s15, 1
        %s146 = sand.u32 %s28, 1
        %s147 = scalar_lea.sflag [#allocation3], %s146
        %s148 = sand.u32 %s28, 1
        %s149 = smul.addr %s148, 8
        %s150 = scalar_lea.vmem [#allocation2], %s149
        // Predicated region
        $region29: #{tpu_custom_call.1} parent=27 // pred_check
          %p151 = pneg %p41
        $region30: #{tpu_custom_call.1} parent=27 // pred_check_branch
          %153 = sbr.rel (%p151) target = $region32
        $region31: #{tpu_custom_call.1} parent=27 // pred_region
          %154 = dma.done %s147, 128
        $region32: #{tpu_custom_call.1} parent=27 // pred_fallthru
          _
        // Predicated region
        $region33: #{tpu_custom_call.1} parent=27 // pred_check
          %p155 = pneg %p62
        $region34: #{tpu_custom_call.1} parent=27 // pred_check_branch
          %157 = sbr.rel (%p155) target = $region36
        $region35: #{tpu_custom_call.1} parent=27 // pred_region
          %158 = dma.done [#allocation6], 16384
        $region36: #{tpu_custom_call.1} parent=27 // pred_fallthru
          _
        %s159 = sand.u32 %s28, 1
        %s160 = scalar_lea.sflag [#allocation3], %s159
        %s161 = sand.u32 %s28, 1
        %s162 = smul.addr %s161, 8
        %s163 = scalar_lea.vmem [#allocation2], %s162
        %p164 = pneg %p41
        %p165 = pneg %p38
        %p166 = pneg %p62
        %p167 = pneg %p59
        %p168 = pneg %p88
        %p169 = pneg %p85
        %s170 = sand.u32 %s75, 1
        %s171 = scalar_lea.sflag [#allocation4], %s170
        %s172 = sand.u32 %s75, 1
        %s173 = smul.addr %s172, 2
        %s174 = scalar_lea.vmem [#allocation7], %s173
        %v175 = vld [vmem:[%s150] sm:$0xff]
        %v177 = vcombine.high %v175, %v175
        %vm179 = vcmask 1043456
        %v180 = vsel %vm179, %v175, 0.0
        %v181 = vrot.slane %v180, 4
        %v182 = vadd.f32 %v180, %v181
        %v183 = vrot.slane %v182, 2
        %v184 = vadd.f32 %v182, %v183
        %v185 = vrot.slane %v184, 1
        %v186 = vadd.f32 %v184, %v185
        %v187 = vsel %vm179, %v177, 0.0
        %v188 = vrot.slane %v187, 4
        %v189 = vadd.f32 %v187, %v188
        %v190 = vrot.slane %v189, 2
        %v191 = vadd.f32 %v189, %v190
        %v192 = vrot.slane %v191, 1
        %v193 = vadd.f32 %v191, %v192
        %v194 = vsel %vm179, %v175, -inf
        %v195 = vrot.slane %v194, 4
        %v196 = vmax.f32 %v194, %v195
        %v197 = vrot.slane %v196, 2
        %v198 = vmax.f32 %v196, %v197
        %v199 = vrot.slane %v198, 1
        %v200 = vmax.f32 %v198, %v199
        %v201 = vsel %vm179, %v177, -inf
        %v202 = vrot.slane %v201, 4
        %v203 = vmax.f32 %v201, %v202
        %v204 = vrot.slane %v203, 2
        %v205 = vmax.f32 %v203, %v204
        %v206 = vrot.slane %v205, 1
        %v207 = vmax.f32 %v205, %v206
        %v208 = vld [vmem:[#allocation5] sm:$0xff]
        %v209 = vld [vmem:[#allocation5 + $0x8] sm:$0xff]
        %v210 = vld [vmem:[#allocation5 + $0x10] sm:$0xff]
        %v211 = vld [vmem:[#allocation5 + $0x18] sm:$0xff]
        %v212 = vld [vmem:[#allocation5 + $0x20] sm:$0xff]
        %v213 = vld [vmem:[#allocation5 + $0x28] sm:$0xff]
        %v214 = vld [vmem:[#allocation5 + $0x30] sm:$0xff]
        %v215 = vld [vmem:[#allocation5 + $0x38] sm:$0xff]
        %v216 = vld [vmem:[#allocation5 + $0x40] sm:$0xff]
        %v217 = vld [vmem:[#allocation5 + $0x48] sm:$0xff]
        %v218 = vld [vmem:[#allocation5 + $0x50] sm:$0xff]
        %v219 = vld [vmem:[#allocation5 + $0x58] sm:$0xff]
        %v220 = vld [vmem:[#allocation5 + $0x60] sm:$0xff]
        %v221 = vld [vmem:[#allocation5 + $0x68] sm:$0xff]
        %v222 = vld [vmem:[#allocation5 + $0x70] sm:$0xff]
        %v223 = vld [vmem:[#allocation5 + $0x78] sm:$0xff]
        %v224 = vld [vmem:[#allocation5 + $0x80] sm:$0xff]
        %v225 = vld [vmem:[#allocation5 + $0x88] sm:$0xff]
        %v226 = vld [vmem:[#allocation5 + $0x90] sm:$0xff]
        %v227 = vld [vmem:[#allocation5 + $0x98] sm:$0xff]
        %v228 = vld [vmem:[#allocation5 + $0xa0] sm:$0xff]
        %v229 = vld [vmem:[#allocation5 + $0xa8] sm:$0xff]
        %v230 = vld [vmem:[#allocation5 + $0xb0] sm:$0xff]
        %v231 = vld [vmem:[#allocation5 + $0xb8] sm:$0xff]
        %v232 = vld [vmem:[#allocation5 + $0xc0] sm:$0xff]
        %v233 = vld [vmem:[#allocation5 + $0xc8] sm:$0xff]
        %v234 = vld [vmem:[#allocation5 + $0xd0] sm:$0xff]
        %v235 = vld [vmem:[#allocation5 + $0xd8] sm:$0xff]
        %v236 = vld [vmem:[#allocation5 + $0xe0] sm:$0xff]
        %v237 = vld [vmem:[#allocation5 + $0xe8] sm:$0xff]
        %v238 = vld [vmem:[#allocation5 + $0xf0] sm:$0xff]
        %v239 = vld [vmem:[#allocation5 + $0xf8] sm:$0xff]
        %v240 = vld [vmem:[#allocation5 + $0x100] sm:$0xff]
        %v241 = vld [vmem:[#allocation5 + $0x108] sm:$0xff]
        %v242 = vld [vmem:[#allocation5 + $0x110] sm:$0xff]
        %v243 = vld [vmem:[#allocation5 + $0x118] sm:$0xff]
        %v244 = vld [vmem:[#allocation5 + $0x120] sm:$0xff]
        %v245 = vld [vmem:[#allocation5 + $0x128] sm:$0xff]
        %v246 = vld [vmem:[#allocation5 + $0x130] sm:$0xff]
        %v247 = vld [vmem:[#allocation5 + $0x138] sm:$0xff]
        %v248 = vld [vmem:[#allocation5 + $0x140] sm:$0xff]
        %v249 = vld [vmem:[#allocation5 + $0x148] sm:$0xff]
        %v250 = vld [vmem:[#allocation5 + $0x150] sm:$0xff]
        %v251 = vld [vmem:[#allocation5 + $0x158] sm:$0xff]
        %v252 = vld [vmem:[#allocation5 + $0x160] sm:$0xff]
        %v253 = vld [vmem:[#allocation5 + $0x168] sm:$0xff]
        %v254 = vld [vmem:[#allocation5 + $0x170] sm:$0xff]
        %v255 = vld [vmem:[#allocation5 + $0x178] sm:$0xff]
        %v256 = vld [vmem:[#allocation5 + $0x180] sm:$0xff]
        %v257 = vld [vmem:[#allocation5 + $0x188] sm:$0xff]
        %v258 = vld [vmem:[#allocation5 + $0x190] sm:$0xff]
        %v259 = vld [vmem:[#allocation5 + $0x198] sm:$0xff]
        %v260 = vld [vmem:[#allocation5 + $0x1a0] sm:$0xff]
        %v261 = vld [vmem:[#allocation5 + $0x1a8] sm:$0xff]
        %v262 = vld [vmem:[#allocation5 + $0x1b0] sm:$0xff]
        %v263 = vld [vmem:[#allocation5 + $0x1b8] sm:$0xff]
        %v264 = vld [vmem:[#allocation5 + $0x1c0] sm:$0xff]
        %v265 = vld [vmem:[#allocation5 + $0x1c8] sm:$0xff]
        %v266 = vld [vmem:[#allocation5 + $0x1d0] sm:$0xff]
        %v267 = vld [vmem:[#allocation5 + $0x1d8] sm:$0xff]
        %v268 = vld [vmem:[#allocation5 + $0x1e0] sm:$0xff]
        %v269 = vld [vmem:[#allocation5 + $0x1e8] sm:$0xff]
        %v270 = vld [vmem:[#allocation5 + $0x1f0] sm:$0xff]
        %v271 = vld [vmem:[#allocation5 + $0x1f8] sm:$0xff]
        %v272 = vld [vmem:[#allocation5 + $0x200] sm:$0xff]
        %v273 = vld [vmem:[#allocation5 + $0x208] sm:$0xff]
        %v274 = vld [vmem:[#allocation5 + $0x210] sm:$0xff]
        %v275 = vld [vmem:[#allocation5 + $0x218] sm:$0xff]
        %v276 = vld [vmem:[#allocation5 + $0x220] sm:$0xff]
        %v277 = vld [vmem:[#allocation5 + $0x228] sm:$0xff]
        %v278 = vld [vmem:[#allocation5 + $0x230] sm:$0xff]
        %v279 = vld [vmem:[#allocation5 + $0x238] sm:$0xff]
        %v280 = vld [vmem:[#allocation5 + $0x240] sm:$0xff]
        %v281 = vld [vmem:[#allocation5 + $0x248] sm:$0xff]
        %v282 = vld [vmem:[#allocation5 + $0x250] sm:$0xff]
        %v283 = vld [vmem:[#allocation5 + $0x258] sm:$0xff]
        %v284 = vld [vmem:[#allocation5 + $0x260] sm:$0xff]
        %v285 = vld [vmem:[#allocation5 + $0x268] sm:$0xff]
        %v286 = vld [vmem:[#allocation5 + $0x270] sm:$0xff]
        %v287 = vld [vmem:[#allocation5 + $0x278] sm:$0xff]
        %v288 = vld [vmem:[#allocation5 + $0x280] sm:$0xff]
        %v289 = vld [vmem:[#allocation5 + $0x288] sm:$0xff]
        %v290 = vld [vmem:[#allocation5 + $0x290] sm:$0xff]
        %v291 = vld [vmem:[#allocation5 + $0x298] sm:$0xff]
        %v292 = vld [vmem:[#allocation5 + $0x2a0] sm:$0xff]
        %v293 = vld [vmem:[#allocation5 + $0x2a8] sm:$0xff]
        %v294 = vld [vmem:[#allocation5 + $0x2b0] sm:$0xff]
        %v295 = vld [vmem:[#allocation5 + $0x2b8] sm:$0xff]
        %v296 = vld [vmem:[#allocation5 + $0x2c0] sm:$0xff]
        %v297 = vld [vmem:[#allocation5 + $0x2c8] sm:$0xff]
        %v298 = vld [vmem:[#allocation5 + $0x2d0] sm:$0xff]
        %v299 = vld [vmem:[#allocation5 + $0x2d8] sm:$0xff]
        %v300 = vld [vmem:[#allocation5 + $0x2e0] sm:$0xff]
        %v301 = vld [vmem:[#allocation5 + $0x2e8] sm:$0xff]
        %v302 = vld [vmem:[#allocation5 + $0x2f0] sm:$0xff]
        %v303 = vld [vmem:[#allocation5 + $0x2f8] sm:$0xff]
        %v304 = vld [vmem:[#allocation5 + $0x300] sm:$0xff]
        %v305 = vld [vmem:[#allocation5 + $0x308] sm:$0xff]
        %v306 = vld [vmem:[#allocation5 + $0x310] sm:$0xff]
        %v307 = vld [vmem:[#allocation5 + $0x318] sm:$0xff]
        %v308 = vld [vmem:[#allocation5 + $0x320] sm:$0xff]
        %v309 = vld [vmem:[#allocation5 + $0x328] sm:$0xff]
        %v310 = vld [vmem:[#allocation5 + $0x330] sm:$0xff]
        %v311 = vld [vmem:[#allocation5 + $0x338] sm:$0xff]
        %v312 = vld [vmem:[#allocation5 + $0x340] sm:$0xff]
        %v313 = vld [vmem:[#allocation5 + $0x348] sm:$0xff]
        %v314 = vld [vmem:[#allocation5 + $0x350] sm:$0xff]
        %v315 = vld [vmem:[#allocation5 + $0x358] sm:$0xff]
        %v316 = vld [vmem:[#allocation5 + $0x360] sm:$0xff]
        %v317 = vld [vmem:[#allocation5 + $0x368] sm:$0xff]
        %v318 = vld [vmem:[#allocation5 + $0x370] sm:$0xff]
        %v319 = vld [vmem:[#allocation5 + $0x378] sm:$0xff]
        %v320 = vld [vmem:[#allocation5 + $0x380] sm:$0xff]
        %v321 = vld [vmem:[#allocation5 + $0x388] sm:$0xff]
        %v322 = vld [vmem:[#allocation5 + $0x390] sm:$0xff]
        %v323 = vld [vmem:[#allocation5 + $0x398] sm:$0xff]
        %v324 = vld [vmem:[#allocation5 + $0x3a0] sm:$0xff]
        %v325 = vld [vmem:[#allocation5 + $0x3a8] sm:$0xff]
        %v326 = vld [vmem:[#allocation5 + $0x3b0] sm:$0xff]
        %v327 = vld [vmem:[#allocation5 + $0x3b8] sm:$0xff]
        %v328 = vld [vmem:[#allocation5 + $0x3c0] sm:$0xff]
        %v329 = vld [vmem:[#allocation5 + $0x3c8] sm:$0xff]
        %v330 = vld [vmem:[#allocation5 + $0x3d0] sm:$0xff]
        %v331 = vld [vmem:[#allocation5 + $0x3d8] sm:$0xff]
        %v332 = vld [vmem:[#allocation5 + $0x3e0] sm:$0xff]
        %v333 = vld [vmem:[#allocation5 + $0x3e8] sm:$0xff]
        %v334 = vld [vmem:[#allocation5 + $0x3f0] sm:$0xff]
        %v335 = vld [vmem:[#allocation5 + $0x3f8] sm:$0xff]
        %336 = vmatprep.subr.mxu0 %v239
        %337 = vmatpush1.msra.mxu0 %v238
        %338 = vmatprep.subr.mxu0 %v237
        %339 = vmatpush1.msra.mxu0 %v236
        %340 = vmatprep.subr.mxu0 %v235
        %341 = vmatpush1.msra.mxu0 %v234
        %342 = vmatprep.subr.mxu0 %v233
        %343 = vmatpush1.msra.mxu0 %v232
        %344 = vmatprep.subr.mxu0 %v231
        %345 = vmatpush1.msra.mxu0 %v230
        %346 = vmatprep.subr.mxu0 %v229
        %347 = vmatpush1.msra.mxu0 %v228
        %348 = vmatprep.subr.mxu0 %v227
        %349 = vmatpush1.msra.mxu0 %v226
        %350 = vmatprep.subr.mxu0 %v225
        %351 = vmatpush1.msra.mxu0 %v224
        %352 = vmatprep.subr.mxu0 %v223
        %353 = vmatpush1.msra.mxu0 %v222
        %354 = vmatprep.subr.mxu0 %v221
        %355 = vmatpush1.msra.mxu0 %v220
        %356 = vmatprep.subr.mxu0 %v219
        %357 = vmatpush1.msra.mxu0 %v218
        %358 = vmatprep.subr.mxu0 %v217
        %359 = vmatpush1.msra.mxu0 %v216
        %360 = vmatprep.subr.mxu0 %v215
        %361 = vmatpush1.msra.mxu0 %v214
        %362 = vmatprep.subr.mxu0 %v213
        %363 = vmatpush1.msra.mxu0 %v212
        %364 = vmatprep.subr.mxu0 %v211
        %365 = vmatpush1.msra.mxu0 %v210
        %366 = vmatprep.subr.mxu0 %v209
        %367 = vmatpush1.msra.mxu0 %v208
        %368 = vmatprep.subr.mxu0 %v271
        %369 = vmatpush2.msra.mxu0 %v270
        %370 = vmatprep.subr.mxu0 %v269
        %371 = vmatpush2.msra.mxu0 %v268
        %372 = vmatprep.subr.mxu0 %v267
        %373 = vmatpush2.msra.mxu0 %v266
        %374 = vmatprep.subr.mxu0 %v265
        %375 = vmatpush2.msra.mxu0 %v264
        %376 = vmatprep.subr.mxu0 %v263
        %377 = vmatpush2.msra.mxu0 %v262
        %378 = vmatprep.subr.mxu0 %v261
        %379 = vmatpush2.msra.mxu0 %v260
        %380 = vmatprep.subr.mxu0 %v259
        %381 = vmatpush2.msra.mxu0 %v258
        %382 = vmatprep.subr.mxu0 %v257
        %383 = vmatpush2.msra.mxu0 %v256
        %384 = vmatprep.subr.mxu0 %v255
        %385 = vmatpush2.msra.mxu0 %v254
        %386 = vmatprep.subr.mxu0 %v253
        %387 = vmatpush2.msra.mxu0 %v252
        %388 = vmatprep.subr.mxu0 %v251
        %389 = vmatpush2.msra.mxu0 %v250
        %390 = vmatprep.subr.mxu0 %v249
        %391 = vmatpush2.msra.mxu0 %v248
        %392 = vmatprep.subr.mxu0 %v247
        %393 = vmatpush2.msra.mxu0 %v246
        %394 = vmatprep.subr.mxu0 %v245
        %395 = vmatpush2.msra.mxu0 %v244
        %396 = vmatprep.subr.mxu0 %v243
        %397 = vmatpush2.msra.mxu0 %v242
        %398 = vmatprep.subr.mxu0 %v241
        %399 = vmatpush2.msra.mxu0 %v240
        %400 = vmatprep.mubr.f32.mxu0 %v193
        %401 = vmatmul.mubr.f32.gmra.mxu0 %v186
        %v402 = vpop.f32.mrf.mxu0
        %v403 = vadd.f32 0.0, %v402
        %v404 = vpop.f32.mrf.mxu0
        %v405 = vadd.f32 0.0, %v404
        %406 = vdwg.mxu0
        %407 = vmatprep.subr.mxu0 %v303
        %408 = vmatpush1.msra.mxu0 %v302
        %409 = vmatprep.subr.mxu0 %v301
        %410 = vmatpush1.msra.mxu0 %v300
        %411 = vmatprep.subr.mxu0 %v299
        %412 = vmatpush1.msra.mxu0 %v298
        %413 = vmatprep.subr.mxu0 %v297
        %414 = vmatpush1.msra.mxu0 %v296
        %415 = vmatprep.subr.mxu0 %v295
        %416 = vmatpush1.msra.mxu0 %v294
        %417 = vmatprep.subr.mxu0 %v293
        %418 = vmatpush1.msra.mxu0 %v292
        %419 = vmatprep.subr.mxu0 %v291
        %420 = vmatpush1.msra.mxu0 %v290
        %421 = vmatprep.subr.mxu0 %v289
        %422 = vmatpush1.msra.mxu0 %v288
        %423 = vmatprep.subr.mxu0 %v287
        %424 = vmatpush1.msra.mxu0 %v286
        %425 = vmatprep.subr.mxu0 %v285
        %426 = vmatpush1.msra.mxu0 %v284
        %427 = vmatprep.subr.mxu0 %v283
        %428 = vmatpush1.msra.mxu0 %v282
        %429 = vmatprep.subr.mxu0 %v281
        %430 = vmatpush1.msra.mxu0 %v280
        %431 = vmatprep.subr.mxu0 %v279
        %432 = vmatpush1.msra.mxu0 %v278
        %433 = vmatprep.subr.mxu0 %v277
        %434 = vmatpush1.msra.mxu0 %v276
        %435 = vmatprep.subr.mxu0 %v275
        %436 = vmatpush1.msra.mxu0 %v274
        %437 = vmatprep.subr.mxu0 %v273
        %438 = vmatpush1.msra.mxu0 %v272
        %439 = vmatprep.subr.mxu0 %v335
        %440 = vmatpush2.msra.mxu0 %v334
        %441 = vmatprep.subr.mxu0 %v333
        %442 = vmatpush2.msra.mxu0 %v332
        %443 = vmatprep.subr.mxu0 %v331
        %444 = vmatpush2.msra.mxu0 %v330
        %445 = vmatprep.subr.mxu0 %v329
        %446 = vmatpush2.msra.mxu0 %v328
        %447 = vmatprep.subr.mxu0 %v327
        %448 = vmatpush2.msra.mxu0 %v326
        %449 = vmatprep.subr.mxu0 %v325
        %450 = vmatpush2.msra.mxu0 %v324
        %451 = vmatprep.subr.mxu0 %v323
        %452 = vmatpush2.msra.mxu0 %v322
        %453 = vmatprep.subr.mxu0 %v321
        %454 = vmatpush2.msra.mxu0 %v320
        %455 = vmatprep.subr.mxu0 %v319
        %456 = vmatpush2.msra.mxu0 %v318
        %457 = vmatprep.subr.mxu0 %v317
        %458 = vmatpush2.msra.mxu0 %v316
        %459 = vmatprep.subr.mxu0 %v315
        %460 = vmatpush2.msra.mxu0 %v314
        %461 = vmatprep.subr.mxu0 %v313
        %462 = vmatpush2.msra.mxu0 %v312
        %463 = vmatprep.subr.mxu0 %v311
        %464 = vmatpush2.msra.mxu0 %v310
        %465 = vmatprep.subr.mxu0 %v309
        %466 = vmatpush2.msra.mxu0 %v308
        %467 = vmatprep.subr.mxu0 %v307
        %468 = vmatpush2.msra.mxu0 %v306
        %469 = vmatprep.subr.mxu0 %v305
        %470 = vmatpush2.msra.mxu0 %v304
        %471 = vmatprep.mubr.f32.mxu0 %v207
        %472 = vmatmul.mubr.f32.gmra.mxu0 %v200
        %v473 = vpop.f32.mrf.mxu0
        %v474 = vadd.f32 %v403, %v473
        %v475 = vpop.f32.mrf.mxu0
        %v476 = vadd.f32 %v405, %v475
        %477 = vdwg.mxu0
        %v478 = vxor.u32 %v474, 2147483648
        %v479 = vxor.u32 %v476, 2147483648
        %v480 = vmul.f32 %v478, 1.442695
        %v481 = vpow.pop %v480
        %v482 = vmul.f32 %v479, 1.442695
        %v483 = vpow.pop %v482
        %v484 = vadd.f32 %v481, 1.0
        %v485 = vadd.f32 %v483, 1.0
        %v486 = vrcp.pop %v484
        %v487 = vmul.f32 1.0, %v486
        %v488 = vrcp.pop %v485
        %v489 = vmul.f32 1.0, %v488
        %v492 = vcombine.low %v487, %v489
        %v494 = vunpack.c.l.s4 1966171168
        %v495 = vunpack.c.0.s8 %v494
        %v496 = vlaneseq
        %v497 = vshrl.u32 %v496, 7
        %v498 = vsub.s32 %v495, %v497
        %v499 = vrot.slane %v492, %v498
        %v501 = vunpack.c.l.s4 1966171168
        %v502 = vunpack.c.0.s8 %v501
        %v503 = vlaneseq
        %v504 = vshrl.u32 %v503, 7
        %v505 = vsub.s32 %v502, %v504
        %v506 = vrot.slane %v499, %v505
        %v508 = vlaneseq
        %vm509 = vcmp.ge.s32.totalorder %v508, 0
        %vm510 = vcmp.lt.s32.totalorder %v508, 256
        %vm511 = vmand %vm509, %vm510
        %512 = vst.msk [vmem:[%s174] sm:$0x3] %vm511, %v506
        %s513 = sand.u32 %s75, 1
        %s514 = scalar_lea.sflag [#allocation4], %s513
        %s515 = sand.u32 %s75, 1
        %s516 = smul.addr %s515, 2
        %s517 = scalar_lea.vmem [#allocation7], %s516
        // Predicated region
        $region37: #{tpu_custom_call.1} parent=27 // pred_check
          %p518 = pneg %p85
        $region38: #{tpu_custom_call.1} parent=27 // pred_check_branch
          %520 = sbr.rel (%p518) target = $region40
        $region39: #{tpu_custom_call.1} parent=27 // pred_region
          %s522 = ssub.s32 32, 32
          %523 = vsyncadd %s514, %s522
          %s524 = smul.addr %s20, 2
          %s525 = smul.addr %s524, 16
          %s526 = scalar_lea.hbm %s2, %s525
          %s528 = sshll.u32 %s517, 4
          %s529 = int_to_ptr.vmem [resolvable:$true] %s528
          %531 = dma.vmem_to_hbm [thread:$0]  %s529, 32, %s526, %s514
        $region40: #{tpu_custom_call.1} parent=27 // pred_fallthru
          _
      $region28: #{tpu_custom_call.1} parent=5 // pred_fallthru
        _
      %p532 = scmp.le.s32.totalorder 2, %s15
      // Predicated region
      $region41: #{tpu_custom_call.1} parent=5 // pred_check
        %p533 = pneg %p532
      $region42: #{tpu_custom_call.1} parent=5 // pred_check_branch
        %535 = sbr.rel (%p533) target = $region44
      $region43: #{tpu_custom_call.1} parent=5 // pred_region
        %s536 = ssub.s32 %s15, 2
        // Predicated region
        $region45: #{tpu_custom_call.1} parent=43 // pred_check
          %p537 = pneg %p91
        $region46: #{tpu_custom_call.1} parent=43 // pred_check_branch
          %539 = sbr.rel (%p537) target = $region48
        $region47: #{tpu_custom_call.1} parent=43 // pred_region
          %s540 = sand.u32 %s76, 1
          %s541 = scalar_lea.sflag [#allocation4], %s540
          %s542 = sand.u32 %s76, 1
          %s543 = smul.addr %s542, 2
          %s544 = scalar_lea.vmem [#allocation7], %s543
          %545 = dma.done %s541, 32
        $region48: #{tpu_custom_call.1} parent=43 // pred_fallthru
          _
      $region44: #{tpu_custom_call.1} parent=5 // pred_fallthru
        _
    $region6: #{tpu_custom_call.1} parent=1 // loop_footer
      %s19 = sadd.s32 1, %s15
    $region7: #{tpu_custom_call.1} parent=1 // loop_footer_branch
      %14 = sbr.rel target = $region3
    $region8: #{tpu_custom_call.1} parent=1 // loop_exit
      _
    %546 = vsyncpa [#allocation3], 1
    %s547 = scalar_lea.sflag [#allocation3], 1
    %548 = vsyncpa %s547, 1
    %549 = vsyncpa [#allocation6], 1
    %550 = vsyncpa [#allocation4], 1
    %s551 = scalar_lea.sflag [#allocation4], 1
    %552 = vsyncpa %s551, 1

</llo_original>
